<compile_context>
chip_gen: v6e
topology: v6e:2x2x1
jax: 0.10.0
libtpu: 0.0.40
codegen_flags: <defaults>
</compile_context>

<pallas_src>
import functools

import jax
import jax.numpy as jnp
from jax.experimental import pallas as pl
from jax.experimental.pallas import tpu as pltpu

LANE = 128
SUBLANE = 8
KPAD = 16      # padding multiple for contraction / hidden dims (bf16-friendly)


def _pad_to(n, m):
    return ((n + m - 1) // m) * m


# --------------------------------------------------------------------------
# Kernel
# --------------------------------------------------------------------------
def _moe_kernel(num_layers, export_num, x_ref, gw_ref, gb_ref, *refs):
    # refs = (w_0, b_0, ..., w_{L-1}, b_{L-1}, o_ref, gate_sc, acc_sc)
    o_ref = refs[2 * num_layers]
    gate_sc = refs[2 * num_layers + 1]     # (TM, E_p)   f32 gate probabilities
    acc_sc = refs[2 * num_layers + 2]      # (TM, Dout_p) f32 mixture accumulator

    e = pl.program_id(1)

    # ---- once per batch tile: gate softmax + accumulator init -------------
    @pl.when(e == 0)
    def _():
        logits = jnp.dot(x_ref[...], gw_ref[...],
                         preferred_element_type=jnp.float32)          # (TM, E_p)
        logits = logits + gb_ref[...]
        col = jax.lax.broadcasted_iota(jnp.int32, logits.shape, 1)
        logits = jnp.where(col < export_num, logits, -1e30)           # mask pads (f32)
        m = jnp.max(logits, axis=-1, keepdims=True)
        p = jnp.exp(logits - m)
        gate_sc[...] = p / jnp.sum(p, axis=-1, keepdims=True)
        acc_sc[...] = jnp.zeros_like(acc_sc)

    # ---- this expert's MLP (bf16 matmul operands, f32 accumulation) -------
    h = x_ref[...]                                                    # (TM, Din_p)
    for l in range(num_layers):                                       # static unroll
        w = refs[2 * l][0]                                            # (Din_l_p, Dout_l_p)
        b = refs[2 * l + 1][0]                                        # (1, Dout_l_p) f32
        a = jnp.dot(h, w, preferred_element_type=jnp.float32) + b
        a = jnp.maximum(a, 0.0)                                       # ReLU (Dropout = id)
        h = a.astype(w.dtype) if l + 1 < num_layers else a            # last layer stays f32

    # ---- gate column for this expert (masked lane-reduce, XLU) ------------
    gate = gate_sc[...]
    gcol = jax.lax.broadcasted_iota(jnp.int32, gate.shape, 1)
    g_e = jnp.sum(jnp.where(gcol == e, gate, 0.0), axis=-1, keepdims=True)  # (TM, 1)

    acc_sc[...] += g_e * h

    @pl.when(e == pl.num_programs(1) - 1)
    def _():
        o_ref[...] = acc_sc[...].astype(o_ref.dtype)


# --------------------------------------------------------------------------
# One-time parameter preparation (stacking / padding / bf16 cast)
# --------------------------------------------------------------------------
def prepare_moe_params(gate_w, gate_b, expert_params, param_dtype=jnp.bfloat16):
    """gate_w: (inp_dim, E); gate_b: (E,);
    expert_params: list (per expert) of list (per layer) of (w (din,dout), b (dout,))."""
    din, E = gate_w.shape
    num_layers = len(expert_params[0])
    dims = [din] + [expert_params[0][l][0].shape[1] for l in range(num_layers)]

    # contraction/hidden dims -> multiple of 16; final output dim -> 128 lanes
    dims_p = [_pad_to(d, KPAD) for d in dims[:-1]] + [_pad_to(dims[-1], LANE)]
    E_p = _pad_to(E, LANE)   # one lane tile for the gate logits (negligible cost)

    gwp = jnp.zeros((dims_p[0], E_p), param_dtype).at[:din, :E].set(
        gate_w.astype(param_dtype))
    gbp = jnp.zeros((1, E_p), jnp.float32).at[0, :E].set(gate_b.astype(jnp.float32))

    layers = []
    for l in range(num_layers):
        d_in, d_out = dims[l], dims[l + 1]
        w_stack = jnp.stack([expert_params[e][l][0] for e in range(E)], 0)
        b_stack = jnp.stack([expert_params[e][l][1] for e in range(E)], 0)
        wp = jnp.zeros((E, dims_p[l], dims_p[l + 1]), param_dtype)
        wp = wp.at[:, :d_in, :d_out].set(w_stack.astype(param_dtype))
        bp = jnp.zeros((E, 1, dims_p[l + 1]), jnp.float32)
        bp = bp.at[:, 0, :d_out].set(b_stack.astype(jnp.float32))
        layers += [wp, bp]

    return dict(export_num=E, num_layers=num_layers, dims=tuple(dims),
                dims_p=tuple(dims_p), e_pad=E_p, param_dtype=param_dtype,
                gate_w=gwp, gate_b=gbp, layers=tuple(layers))


# --------------------------------------------------------------------------
# Forward wrapper
# --------------------------------------------------------------------------
def moe_forward(x, prepared):
    B, din = x.shape
    E = prepared["export_num"]
    num_layers = prepared["num_layers"]
    dims = prepared["dims"]
    dims_p = prepared["dims_p"]
    E_p = prepared["e_pad"]
    pdt = prepared["param_dtype"]
    assert din == dims[0]

    # Batch tile: sublane aligned; split into >=2 tiles when B allows so both
    # v7x TensorCores get work; cap at 256 rows (amortizes per-step overhead
    # on v5e/v6e while keeping activation tiles small in VMEM).
    if B <= SUBLANE:
        TM = _pad_to(B, SUBLANE)
    else:
        TM = min(256, _pad_to(pl.cdiv(B, 2), SUBLANE))
    Bp = _pad_to(B, TM)

    xp = jnp.zeros((Bp, dims_p[0]), pdt).at[:B, :din].set(x.astype(pdt))

    kernel = functools.partial(_moe_kernel, num_layers, E)

    in_specs = [
        pl.BlockSpec((TM, dims_p[0]), lambda i, e: (i, 0)),            # x batch tile
        # gate weights/bias: block index never changes -> single-buffered
        pl.BlockSpec((dims_p[0], E_p), lambda i, e: (0, 0),
                     pipeline_mode=pl.Buffered(1)),
        pl.BlockSpec((1, E_p), lambda i, e: (0, 0),
                     pipeline_mode=pl.Buffered(1)),
    ]
    for l in range(num_layers):
        # one expert's layer-l weight/bias per grid step
        in_specs.append(pl.BlockSpec((1, dims_p[l], dims_p[l + 1]),
                                     lambda i, e: (e, 0, 0)))
        in_specs.append(pl.BlockSpec((1, 1, dims_p[l + 1]),
                                     lambda i, e: (e, 0, 0)))

    out_spec = pl.BlockSpec((TM, dims_p[-1]), lambda i, e: (i, 0))

    scratch_shapes = [
        pltpu.VMEM((TM, E_p), jnp.float32),          # gate probabilities
        pltpu.VMEM((TM, dims_p[-1]), jnp.float32),   # mixture accumulator
    ]

    # VMEM budget: x/out tiles double-buffered, gate single-buffered, ONE
    # expert's weights double-buffered, plus the two scratch buffers.
    wsize = int(jnp.dtype(pdt).itemsize)
    bytes_w = sum(wsize * dims_p[l] * dims_p[l + 1] for l in range(num_layers))
    bytes_b = sum(4 * dims_p[l + 1] for l in range(num_layers))
    est = (2 * TM * dims_p[0] * wsize
           + dims_p[0] * E_p * wsize + 4 * E_p
           + 2 * (bytes_w + bytes_b)
           + 2 * TM * dims_p[-1] * x.dtype.itemsize
           + 4 * TM * (E_p + dims_p[-1]))
    vmem_limit = int(min(max(2 * est, 32 * 1024 * 1024), 96 * 1024 * 1024))

    out = pl.pallas_call(
        kernel,
        out_shape=jax.ShapeDtypeStruct((Bp, dims_p[-1]), x.dtype),
        grid_spec=pltpu.PrefetchScalarGridSpec(
            num_scalar_prefetch=0,
            grid=(Bp // TM, E),
            in_specs=in_specs,
            out_specs=out_spec,
            scratch_shapes=scratch_shapes,
        ),
        compiler_params=pltpu.CompilerParams(
            dimension_semantics=("parallel", "arbitrary"),
            vmem_limit_bytes=vmem_limit,
        ),
    )(xp, prepared["gate_w"], prepared["gate_b"], *prepared["layers"])

    return out[:B, :dims[-1]]


# --------------------------------------------------------------------------
# Init + reference
# --------------------------------------------------------------------------
def init_moe_params(key, export_num, export_arch, inp_dim, dtype=jnp.float32):
    """nn.Linear-style init: U[-1/sqrt(fan_in), 1/sqrt(fan_in)]."""
    key, kgw, kgb = jax.random.split(key, 3)
    gbound = inp_dim ** -0.5
    gate_w = jax.random.uniform(kgw, (inp_dim, export_num), dtype, -gbound, gbound)
    gate_b = jax.random.uniform(kgb, (export_num,), dtype, -gbound, gbound)
    expert_params = []
    for _ in range(export_num):
        mlp = []
        d = inp_dim
        for dout in export_arch:
            key, kw, kb = jax.random.split(key, 3)
            bound = d ** -0.5
            w = jax.random.uniform(kw, (d, dout), dtype, -bound, bound)
            b = jax.random.uniform(kb, (dout,), dtype, -bound, bound)
            mlp.append((w, b))
            d = dout
        expert_params.append(mlp)
    return gate_w, gate_b, expert_params


def moe_reference(x, gate_w, gate_b, expert_params, param_dtype=jnp.bfloat16):
    """Pure-JAX reference mirroring the kernel's dtype policy (bf16 matmul
    operands, f32 accumulation, f32 softmax/mixture) to isolate kernel bugs."""
    xb = x.astype(param_dtype)
    logits = jnp.dot(xb, gate_w.astype(param_dtype),
                     preferred_element_type=jnp.float32) + gate_b.astype(jnp.float32)
    gate = jax.nn.softmax(logits, axis=-1)                               # (B, E)
    outs = []
    for mlp in expert_params:
        h = xb
        for li, (w, b) in enumerate(mlp):
            a = jnp.dot(h, w.astype(param_dtype),
                        preferred_element_type=jnp.float32) + b.astype(jnp.float32)
            a = jnp.maximum(a, 0.0)
            h = a.astype(param_dtype) if li + 1 < len(mlp) else a
        outs.append(h)
    experts = jnp.stack(outs, axis=1).astype(jnp.float32)                # (B, E, D)
    return jnp.einsum("be,bed->bd", gate, experts,
                      precision=jax.lax.Precision.HIGHEST)


if __name__ == "__main__":
    key = jax.random.PRNGKey(0)
    k_in, k_params = jax.random.split(key)

    batch, inp_dim = 8, 16
    export_num = 4
    export_arch = (32, 64)
    dropout_p = 0.1   # eval mode -> identity

    x = jax.random.normal(k_in, (batch, inp_dim), jnp.float32)
    gate_w, gate_b, expert_params = init_moe_params(
        k_params, export_num, export_arch, inp_dim)

    prepared = prepare_moe_params(gate_w, gate_b, expert_params,
                                  param_dtype=jnp.bfloat16)
    out = moe_forward(x, prepared)
    out = jax.block_until_ready(out)

    ref = moe_reference(x, gate_w, gate_b, expert_params,
                        param_dtype=jnp.bfloat16)
    assert out.shape == (batch, export_arch[-1])
    err = float(jnp.max(jnp.abs(out - ref)))
    assert jnp.allclose(out, ref, atol=2e-3, rtol=2e-3), err

    print("KERNEL_OK")
</pallas_src>

<mosaic_0001>
module attributes {stable_mosaic.version = 11 : i64} {
  func.func @_moe_kernel(%arg0: i32, %arg1: i32, %arg2: memref<8x16xbf16, #tpu.memory_space<vmem>>, %arg3: memref<16x128xbf16, #tpu.memory_space<vmem>>, %arg4: memref<1x128xf32, #tpu.memory_space<vmem>>, %arg5: memref<1x16x32xbf16, #tpu.memory_space<vmem>>, %arg6: memref<1x1x32xf32, #tpu.memory_space<vmem>>, %arg7: memref<1x32x128xbf16, #tpu.memory_space<vmem>>, %arg8: memref<1x1x128xf32, #tpu.memory_space<vmem>>, %arg9: memref<8x128xf32, #tpu.memory_space<vmem>>, %arg10: memref<8x128xf32, #tpu.memory_space<vmem>>, %arg11: memref<8x128xf32, #tpu.memory_space<vmem>>) attributes {dimension_semantics = [#tpu.dimension_semantics<parallel>, #tpu.dimension_semantics<arbitrary>], iteration_bounds = array<i64: 1, 4>, scalar_prefetch = 0 : i64, scratch_operands = 2 : i64, tpu.core_type = #tpu.core_type<tc>, window_params = [{transform_indices = @transform_0, window_bounds = array<i64: 8, 16>}, {pipeline_mode = #tpu.pipeline_mode<synchronous>, transform_indices = @transform_1, window_bounds = array<i64: 16, 128>}, {pipeline_mode = #tpu.pipeline_mode<synchronous>, transform_indices = @transform_2, window_bounds = array<i64: 1, 128>}, {transform_indices = @transform_3, window_bounds = array<i64: 1, 16, 32>}, {transform_indices = @transform_4, window_bounds = array<i64: 1, 1, 32>}, {transform_indices = @transform_5, window_bounds = array<i64: 1, 32, 128>}, {transform_indices = @transform_6, window_bounds = array<i64: 1, 1, 128>}, {transform_indices = @transform_7, window_bounds = array<i64: 8, 128>}]} {
    %c0_i32 = arith.constant 0 : i32
    %0 = arith.cmpi eq, %arg1, %c0_i32 : i32
    %1 = arith.extui %0 : i1 to i32
    %c0_i32_0 = arith.constant 0 : i32
    %2 = arith.cmpi ne, %1, %c0_i32_0 : i32
    scf.if %2 {
      %c0_26 = arith.constant 0 : index
      %c0_27 = arith.constant 0 : index
      %39 = vector.load %arg2[%c0_26, %c0_27] : memref<8x16xbf16, #tpu.memory_space<vmem>>, vector<8x16xbf16>
      %c0_28 = arith.constant 0 : index
      %c0_29 = arith.constant 0 : index
      %40 = vector.load %arg3[%c0_28, %c0_29] : memref<16x128xbf16, #tpu.memory_space<vmem>>, vector<16x128xbf16>
      %cst_30 = arith.constant dense<0.000000e+00> : vector<8x128xf32>
      %41 = tpu.matmul %39, %40, %cst_30 {dimension_numbers = #tpu.dot_dimension_numbers<[1], [0], [0], [1], [0, 0, 1, 1], [], []>} : vector<8x16xbf16>, vector<16x128xbf16>, vector<8x128xf32> -> vector<8x128xf32>
      %c0_31 = arith.constant 0 : index
      %c0_32 = arith.constant 0 : index
      %42 = vector.load %arg4[%c0_31, %c0_32] : memref<1x128xf32, #tpu.memory_space<vmem>>, vector<1x128xf32>
      %43 = vector.broadcast %42 : vector<1x128xf32> to vector<8x128xf32>
      %44 = arith.addf %41, %43 : vector<8x128xf32>
      %45 = tpu.iota {dimensions = array<i32: 1>} : vector<8x128xi32>
      %c4_i32 = arith.constant 4 : i32
      %46 = vector.broadcast %c4_i32 : i32 to vector<8x128xi32>
      %47 = arith.cmpi slt, %45, %46 : vector<8x128xi32>
      %cst_33 = arith.constant -1.000000e+30 : f32
      %48 = vector.broadcast %cst_33 : f32 to vector<8x128xf32>
      %49 = arith.select %47, %44, %48 : vector<8x128xi1>, vector<8x128xf32>
      %cst_34 = arith.constant dense<0xFF800000> : vector<8xf32>
      %50 = vector.multi_reduction <maximumf>, %49, %cst_34 [1] : vector<8x128xf32> to vector<8xf32>
      %51 = vector.shape_cast %50 : vector<8xf32> to vector<8x1xf32>
      %52 = vector.broadcast %51 : vector<8x1xf32> to vector<8x128xf32>
      %53 = arith.subf %49, %52 : vector<8x128xf32>
      %54 = math.exp %53 : vector<8x128xf32>
      %cst_35 = arith.constant dense<0.000000e+00> : vector<8xf32>
      %55 = vector.multi_reduction <add>, %54, %cst_35 [1] : vector<8x128xf32> to vector<8xf32>
      %56 = vector.shape_cast %55 : vector<8xf32> to vector<8x1xf32>
      %57 = vector.broadcast %56 : vector<8x1xf32> to vector<8x128xf32>
      %58 = arith.divf %54, %57 : vector<8x128xf32>
      %c0_36 = arith.constant 0 : index
      %c0_37 = arith.constant 0 : index
      %59 = vector.load %arg10[%c0_36, %c0_37] : memref<8x128xf32, #tpu.memory_space<vmem>>, vector<8x128xf32>
      tpu.vector_store %arg10[%c0_36, %c0_37], %58 {strides = array<i32>} : memref<8x128xf32, #tpu.memory_space<vmem>>, vector<8x128xf32>,
      %cst_38 = arith.constant 0.000000e+00 : f32
      %60 = vector.broadcast %cst_38 : f32 to vector<8x128xf32>
      %c0_39 = arith.constant 0 : index
      %c0_40 = arith.constant 0 : index
      %61 = vector.load %arg11[%c0_39, %c0_40] : memref<8x128xf32, #tpu.memory_space<vmem>>, vector<8x128xf32>
      tpu.vector_store %arg11[%c0_39, %c0_40], %60 {strides = array<i32>} : memref<8x128xf32, #tpu.memory_space<vmem>>, vector<8x128xf32>,
    } else {
    }
    %c0 = arith.constant 0 : index
    %c0_1 = arith.constant 0 : index
    %3 = vector.load %arg2[%c0, %c0_1] : memref<8x16xbf16, #tpu.memory_space<vmem>>, vector<8x16xbf16>
    %c0_2 = arith.constant 0 : index
    %c0_3 = arith.constant 0 : index
    %c0_4 = arith.constant 0 : index
    %4 = vector.load %arg5[%c0_2, %c0_3, %c0_4] : memref<1x16x32xbf16, #tpu.memory_space<vmem>>, vector<1x16x32xbf16>
    %5 = vector.shape_cast %4 : vector<1x16x32xbf16> to vector<16x32xbf16>
    %c0_5 = arith.constant 0 : index
    %c0_6 = arith.constant 0 : index
    %c0_7 = arith.constant 0 : index
    %6 = vector.load %arg6[%c0_5, %c0_6, %c0_7] : memref<1x1x32xf32, #tpu.memory_space<vmem>>, vector<1x1x32xf32>
    %7 = vector.shape_cast %6 : vector<1x1x32xf32> to vector<1x32xf32>
    %cst = arith.constant dense<0.000000e+00> : vector<8x32xf32>
    %8 = tpu.matmul %3, %5, %cst {dimension_numbers = #tpu.dot_dimension_numbers<[1], [0], [0], [1], [0, 0, 1, 1], [], []>} : vector<8x16xbf16>, vector<16x32xbf16>, vector<8x32xf32> -> vector<8x32xf32>
    %9 = vector.broadcast %7 : vector<1x32xf32> to vector<8x32xf32>
    %10 = arith.addf %8, %9 : vector<8x32xf32>
    %cst_8 = arith.constant 0.000000e+00 : f32
    %11 = vector.broadcast %cst_8 : f32 to vector<8x32xf32>
    %12 = arith.maximumf %10, %11 : vector<8x32xf32>
    %13 = arith.truncf %12 : vector<8x32xf32> to vector<8x32xbf16>
    %c0_9 = arith.constant 0 : index
    %c0_10 = arith.constant 0 : index
    %c0_11 = arith.constant 0 : index
    %14 = vector.load %arg7[%c0_9, %c0_10, %c0_11] : memref<1x32x128xbf16, #tpu.memory_space<vmem>>, vector<1x32x128xbf16>
    %15 = vector.shape_cast %14 : vector<1x32x128xbf16> to vector<32x128xbf16>
    %c0_12 = arith.constant 0 : index
    %c0_13 = arith.constant 0 : index
    %c0_14 = arith.constant 0 : index
    %16 = vector.load %arg8[%c0_12, %c0_13, %c0_14] : memref<1x1x128xf32, #tpu.memory_space<vmem>>, vector<1x1x128xf32>
    %17 = vector.shape_cast %16 : vector<1x1x128xf32> to vector<1x128xf32>
    %cst_15 = arith.constant dense<0.000000e+00> : vector<8x128xf32>
    %18 = tpu.matmul %13, %15, %cst_15 {dimension_numbers = #tpu.dot_dimension_numbers<[1], [0], [0], [1], [0, 0, 1, 1], [], []>} : vector<8x32xbf16>, vector<32x128xbf16>, vector<8x128xf32> -> vector<8x128xf32>
    %19 = vector.broadcast %17 : vector<1x128xf32> to vector<8x128xf32>
    %20 = arith.addf %18, %19 : vector<8x128xf32>
    %cst_16 = arith.constant 0.000000e+00 : f32
    %21 = vector.broadcast %cst_16 : f32 to vector<8x128xf32>
    %22 = arith.maximumf %20, %21 : vector<8x128xf32>
    %c0_17 = arith.constant 0 : index
    %c0_18 = arith.constant 0 : index
    %23 = vector.load %arg10[%c0_17, %c0_18] : memref<8x128xf32, #tpu.memory_space<vmem>>, vector<8x128xf32>
    %24 = tpu.iota {dimensions = array<i32: 1>} : vector<8x128xi32>
    %25 = vector.broadcast %arg1 : i32 to vector<8x128xi32>
    %26 = arith.cmpi eq, %24, %25 : vector<8x128xi32>
    %cst_19 = arith.constant 0.000000e+00 : f32
    %27 = vector.broadcast %cst_19 : f32 to vector<8x128xf32>
    %28 = arith.select %26, %23, %27 : vector<8x128xi1>, vector<8x128xf32>
    %cst_20 = arith.constant dense<0.000000e+00> : vector<8xf32>
    %29 = vector.multi_reduction <add>, %28, %cst_20 [1] : vector<8x128xf32> to vector<8xf32>
    %30 = vector.shape_cast %29 : vector<8xf32> to vector<8x1xf32>
    %c0_21 = arith.constant 0 : index
    %c0_22 = arith.constant 0 : index
    %31 = vector.load %arg11[%c0_21, %c0_22] : memref<8x128xf32, #tpu.memory_space<vmem>>, vector<8x128xf32>
    %32 = vector.broadcast %30 : vector<8x1xf32> to vector<8x128xf32>
    %33 = arith.mulf %32, %22 : vector<8x128xf32>
    %34 = arith.addf %31, %33 : vector<8x128xf32>
    %c0_23 = arith.constant 0 : index
    %c0_24 = arith.constant 0 : index
    %35 = vector.load %arg11[%c0_23, %c0_24] : memref<8x128xf32, #tpu.memory_space<vmem>>, vector<8x128xf32>
    tpu.vector_store %arg11[%c0_23, %c0_24], %34 {strides = array<i32>} : memref<8x128xf32, #tpu.memory_space<vmem>>, vector<8x128xf32>,
    %c3_i32 = arith.constant 3 : i32
    %36 = arith.cmpi eq, %arg1, %c3_i32 : i32
    %37 = arith.extui %36 : i1 to i32
    %c0_i32_25 = arith.constant 0 : i32
    %38 = arith.cmpi ne, %37, %c0_i32_25 : i32
    scf.if %38 {
      %c0_26 = arith.constant 0 : index
      %c0_27 = arith.constant 0 : index
      %39 = vector.load %arg11[%c0_26, %c0_27] : memref<8x128xf32, #tpu.memory_space<vmem>>, vector<8x128xf32>
      %c0_28 = arith.constant 0 : index
      %c0_29 = arith.constant 0 : index
      %40 = vector.load %arg9[%c0_28, %c0_29] : memref<8x128xf32, #tpu.memory_space<vmem>>, vector<8x128xf32>
      tpu.vector_store %arg9[%c0_28, %c0_29], %39 {strides = array<i32>} : memref<8x128xf32, #tpu.memory_space<vmem>>, vector<8x128xf32>,
    } else {
    }
    return
  }
  func.func @transform_0(%arg0: i32, %arg1: i32) -> (i32, i32) {
    %c0_i32 = arith.constant 0 : i32
    %c0_i32_0 = arith.constant 0 : i32
    return %arg0, %c0_i32 : i32, i32
  }
  func.func @transform_1(%arg0: i32, %arg1: i32) -> (i32, i32) {
    %c0_i32 = arith.constant 0 : i32
    %c0_i32_0 = arith.constant 0 : i32
    %c0_i32_1 = arith.constant 0 : i32
    return %c0_i32, %c0_i32_0 : i32, i32
  }
  func.func @transform_2(%arg0: i32, %arg1: i32) -> (i32, i32) {
    %c0_i32 = arith.constant 0 : i32
    %c0_i32_0 = arith.constant 0 : i32
    %c0_i32_1 = arith.constant 0 : i32
    return %c0_i32, %c0_i32_0 : i32, i32
  }
  func.func @transform_3(%arg0: i32, %arg1: i32) -> (i32, i32, i32) {
    %c0_i32 = arith.constant 0 : i32
    %c0_i32_0 = arith.constant 0 : i32
    %c0_i32_1 = arith.constant 0 : i32
    return %arg1, %c0_i32, %c0_i32_0 : i32, i32, i32
  }
  func.func @transform_4(%arg0: i32, %arg1: i32) -> (i32, i32, i32) {
    %c0_i32 = arith.constant 0 : i32
    %c0_i32_0 = arith.constant 0 : i32
    %c0_i32_1 = arith.constant 0 : i32
    return %arg1, %c0_i32, %c0_i32_0 : i32, i32, i32
  }
  func.func @transform_5(%arg0: i32, %arg1: i32) -> (i32, i32, i32) {
    %c0_i32 = arith.constant 0 : i32
    %c0_i32_0 = arith.constant 0 : i32
    %c0_i32_1 = arith.constant 0 : i32
    return %arg1, %c0_i32, %c0_i32_0 : i32, i32, i32
  }
  func.func @transform_6(%arg0: i32, %arg1: i32) -> (i32, i32, i32) {
    %c0_i32 = arith.constant 0 : i32
    %c0_i32_0 = arith.constant 0 : i32
    %c0_i32_1 = arith.constant 0 : i32
    return %arg1, %c0_i32, %c0_i32_0 : i32, i32, i32
  }
  func.func @transform_7(%arg0: i32, %arg1: i32) -> (i32, i32) {
    %c0_i32 = arith.constant 0 : i32
    %c0_i32_0 = arith.constant 0 : i32
    return %arg0, %c0_i32 : i32, i32
  }
}

</mosaic_0001>

<llo_original>
// kernel: tpu_custom_call.1
$region0: #{tpu_custom_call.1}
  #allocation0 [shape = 'u32[]', space=smem, size = 0x4, offset = 0x4, fixed_abs, tag = 'smem constant byte address 0x4 - core index']
  #allocation1 [shape = 'u32[144,128]{1,0:T(1,128)}', space=vmem, size = 0x12000, scoped, tag = 'internal scratch']
  #allocation2 [shape = 'f32[8,128]{1,0:T(8,128)}', space=vmem, size = 0x1000, scoped, tag = 'scratch operand']
  #allocation3 [shape = 'f32[8,128]{1,0:T(8,128)}', space=vmem, size = 0x1000, scoped, tag = 'scratch operand']
  %s0 = inlined_call_operand.hbm [shape: bf16[8,16], index: 0, kind: input, shape index: {}]
  %s1 = inlined_call_operand.hbm [shape: bf16[16,128], index: 1, kind: input, shape index: {}]
  %s2 = inlined_call_operand.vmem [shape: f32[1,128], index: 2, kind: input, shape index: {}]
  %s3 = inlined_call_operand.hbm [shape: bf16[4,16,32], index: 3, kind: input, shape index: {}]
  %s4 = inlined_call_operand.vmem [shape: f32[4,1,32], index: 4, kind: input, shape index: {}]
  %s5 = inlined_call_operand.hbm [shape: bf16[4,32,128], index: 5, kind: input, shape index: {}]
  %s6 = inlined_call_operand.vmem [shape: f32[4,1,128], index: 6, kind: input, shape index: {}]
  %s7 = inlined_call_operand.hbm [shape: f32[8,128], index: 7, kind: output, shape index: {}]
  %s8 = sld [smem:[#allocation0]]
  $region85: #{tpu_custom_call.1} parent=0
    _
  %s10 = ssub.s32 1, %s8
  %s11 = scalar_select 0, %s10, %s8
  $region1: #{tpu_custom_call.1} parent=0
    #allocation4 [shape = 'u8[2048]{0}', space=vmem, size = 0x800, scoped, tag = 'input window, operand 0, single buffered']
    #allocation5 [shape = 's32[2]{0}', space=sflag, size = 0x8, scoped, tag = 'scoped memory for tpu_custom_call.1']
    #allocation6 [shape = 's32[2]{0}', space=sflag, size = 0x8, scoped, tag = 'scoped memory for tpu_custom_call.1']
    #allocation7 [shape = 'u8[4096]{0}', space=vmem, size = 0x1000, scoped, tag = 'input window, operand 1, single buffered']
    #allocation8 [shape = 's32[1]{0}', space=sflag, size = 0x4, scoped, tag = 'scoped memory for tpu_custom_call.1']
    #allocation9 [shape = 'u8[8192]{0}', space=vmem, size = 0x2000, scoped, tag = 'input window, operand 3']
    #allocation10 [shape = 'u8[16384]{0}', space=vmem, size = 0x4000, scoped, tag = 'input window, operand 5']
    #allocation11 [shape = 'u8[4096]{0}', space=vmem, size = 0x1000, scoped, tag = 'output window, operand 0, single buffered']
    %12 = vsyncpa [#allocation5], 0
    %13 = vsyncpa [#allocation8], 0
    %14 = vsyncpa [#allocation6], 0
    loop: start=0, step=1, limit=6
    $region2: #{tpu_custom_call.1} parent=1 // loop_pre_header
      _
    $region3: #{tpu_custom_call.1} parent=1 // loop_header
      %s16 = sphi 0, %s20
      %p17 = scmp.ge.s32.totalorder %s16, 6
      %s23 = sphi 0, %s35
      %s24 = sphi 0, %s31
      %s25 = sphi 0, %s23
      %s26 = sphi 0, %s24
      %s27 = sphi 0, %s25
      %s28 = sphi 0, %s26
      %s38 = sphi 0, %s40
      %s41 = sphi 0, %s38
      %s42 = sphi 0, %s41
      %s58 = sphi 0, %s42
      %s62 = sphi 0, %s62
      %s64 = sphi 0, %s62
      %s65 = sphi 0, %s64
      %s79 = sphi 0, %s65
      %s83 = sphi 0, %s83
      %s85 = sphi 0, %s83
      %s86 = sphi 0, %s85
      %s100 = sphi 0, %s86
      %s106 = sphi 0, %s108
      %s109 = sphi 0, %s106
      %s110 = sphi 0, %s109
      %s126 = sphi 0, %s110
      %s132 = sphi 0, %s134
      %s135 = sphi 0, %s132
      %s136 = sphi 0, %s135
      %s152 = sphi 0, %s136
      %s158 = sphi 0, %s160
      %s161 = sphi 0, %s158
      %s162 = sphi 0, %s161
      %s178 = sphi 0, %s162
      %s184 = sphi 0, %s186
      %s187 = sphi 0, %s184
      %s188 = sphi 0, %s187
      %s204 = sphi 0, %s188
      %s210 = sphi 0, %s212
      %s213 = sphi 0, %s210
      %s214 = sphi 0, %s213
      %s230 = sphi 0, %s214
    $region4: #{tpu_custom_call.1} parent=1 // loop_header_branch
      %19 = sbr.rel (%p17) target = $region8
    $region5: #{tpu_custom_call.1} parent=1 // loop_body
      %s21 = ssub.s32 %s16, 1
      %s22 = ssub.s32 %s16, 2
      %s29 = sadd.s32 1, %s24
      %p30 = scmp.ge.s32.totalorder %s29, 4
      %s31 = scalar_select %p30, 0, %s29
      %s32 = sadd.s32 1, %s23
      %s33 = scalar_select %p30, %s32, %s23
      %p34 = scmp.ge.s32.totalorder %s33, 1
      %s35 = scalar_select %p34, 0, %s33
      %s36 = ssub.s32 %s23, %s35
      %p37 = scmp.eq.s32.totalorder %s36, 0
      %s39 = sadd.s32 %s38, 1
      %s40 = scalar_select %p37, %s38, %s39
      %p43 = pneg %p37
      %p44 = scmp.eq.s32.totalorder %s16, 3
      %p45 = por %p43, %p44
      %p46 = scmp.ne.s32.totalorder %s38, %s41
      %p47 = scmp.eq.s32.totalorder %s16, 0
      %p48 = por %p46, %p47
      %p49 = scmp.ne.s32.totalorder %s38, %s41
      %p50 = scmp.eq.s32.totalorder %s21, 3
      %p51 = por %p49, %p50
      %p52 = scmp.ne.s32.totalorder %s41, %s42
      %p53 = scmp.eq.s32.totalorder %s21, 0
      %p54 = por %p52, %p53
      %p55 = scmp.ne.s32.totalorder %s41, %s42
      %p56 = scmp.eq.s32.totalorder %s22, 3
      %p57 = por %p55, %p56
      %p59 = scmp.ne.s32.totalorder %s42, %s58
      %p60 = scmp.eq.s32.totalorder %s22, 0
      %p61 = por %p59, %p60
      %s63 = sadd.s32 %s62, 1
      %p66 = scmp.eq.s32.totalorder %s16, 3
      %p67 = scmp.ne.s32.totalorder %s62, %s64
      %p68 = scmp.eq.s32.totalorder %s16, 0
      %p69 = por %p67, %p68
      %p70 = scmp.ne.s32.totalorder %s62, %s64
      %p71 = scmp.eq.s32.totalorder %s21, 3
      %p72 = por %p70, %p71
      %p73 = scmp.ne.s32.totalorder %s64, %s65
      %p74 = scmp.eq.s32.totalorder %s21, 0
      %p75 = por %p73, %p74
      %p76 = scmp.ne.s32.totalorder %s64, %s65
      %p77 = scmp.eq.s32.totalorder %s22, 3
      %p78 = por %p76, %p77
      %p80 = scmp.ne.s32.totalorder %s65, %s79
      %p81 = scmp.eq.s32.totalorder %s22, 0
      %p82 = por %p80, %p81
      %s84 = sadd.s32 %s83, 1
      %p87 = scmp.eq.s32.totalorder %s16, 3
      %p88 = scmp.ne.s32.totalorder %s83, %s85
      %p89 = scmp.eq.s32.totalorder %s16, 0
      %p90 = por %p88, %p89
      %p91 = scmp.ne.s32.totalorder %s83, %s85
      %p92 = scmp.eq.s32.totalorder %s21, 3
      %p93 = por %p91, %p92
      %p94 = scmp.ne.s32.totalorder %s85, %s86
      %p95 = scmp.eq.s32.totalorder %s21, 0
      %p96 = por %p94, %p95
      %p97 = scmp.ne.s32.totalorder %s85, %s86
      %p98 = scmp.eq.s32.totalorder %s22, 3
      %p99 = por %p97, %p98
      %p101 = scmp.ne.s32.totalorder %s86, %s100
      %p102 = scmp.eq.s32.totalorder %s22, 0
      %p103 = por %p101, %p102
      %s104 = ssub.s32 %s24, %s31
      %p105 = scmp.eq.s32.totalorder %s104, 0
      %s107 = sadd.s32 %s106, 1
      %s108 = scalar_select %p105, %s106, %s107
      %p111 = pneg %p105
      %p112 = scmp.eq.s32.totalorder %s16, 3
      %p113 = por %p111, %p112
      %p114 = scmp.ne.s32.totalorder %s106, %s109
      %p115 = scmp.eq.s32.totalorder %s16, 0
      %p116 = por %p114, %p115
      %p117 = scmp.ne.s32.totalorder %s106, %s109
      %p118 = scmp.eq.s32.totalorder %s21, 3
      %p119 = por %p117, %p118
      %p120 = scmp.ne.s32.totalorder %s109, %s110
      %p121 = scmp.eq.s32.totalorder %s21, 0
      %p122 = por %p120, %p121
      %p123 = scmp.ne.s32.totalorder %s109, %s110
      %p124 = scmp.eq.s32.totalorder %s22, 3
      %p125 = por %p123, %p124
      %p127 = scmp.ne.s32.totalorder %s110, %s126
      %p128 = scmp.eq.s32.totalorder %s22, 0
      %p129 = por %p127, %p128
      %s130 = ssub.s32 %s24, %s31
      %p131 = scmp.eq.s32.totalorder %s130, 0
      %s133 = sadd.s32 %s132, 1
      %s134 = scalar_select %p131, %s132, %s133
      %p137 = pneg %p131
      %p138 = scmp.eq.s32.totalorder %s16, 3
      %p139 = por %p137, %p138
      %p140 = scmp.ne.s32.totalorder %s132, %s135
      %p141 = scmp.eq.s32.totalorder %s16, 0
      %p142 = por %p140, %p141
      %p143 = scmp.ne.s32.totalorder %s132, %s135
      %p144 = scmp.eq.s32.totalorder %s21, 3
      %p145 = por %p143, %p144
      %p146 = scmp.ne.s32.totalorder %s135, %s136
      %p147 = scmp.eq.s32.totalorder %s21, 0
      %p148 = por %p146, %p147
      %p149 = scmp.ne.s32.totalorder %s135, %s136
      %p150 = scmp.eq.s32.totalorder %s22, 3
      %p151 = por %p149, %p150
      %p153 = scmp.ne.s32.totalorder %s136, %s152
      %p154 = scmp.eq.s32.totalorder %s22, 0
      %p155 = por %p153, %p154
      %s156 = ssub.s32 %s24, %s31
      %p157 = scmp.eq.s32.totalorder %s156, 0
      %s159 = sadd.s32 %s158, 1
      %s160 = scalar_select %p157, %s158, %s159
      %p163 = pneg %p157
      %p164 = scmp.eq.s32.totalorder %s16, 3
      %p165 = por %p163, %p164
      %p166 = scmp.ne.s32.totalorder %s158, %s161
      %p167 = scmp.eq.s32.totalorder %s16, 0
      %p168 = por %p166, %p167
      %p169 = scmp.ne.s32.totalorder %s158, %s161
      %p170 = scmp.eq.s32.totalorder %s21, 3
      %p171 = por %p169, %p170
      %p172 = scmp.ne.s32.totalorder %s161, %s162
      %p173 = scmp.eq.s32.totalorder %s21, 0
      %p174 = por %p172, %p173
      %p175 = scmp.ne.s32.totalorder %s161, %s162
      %p176 = scmp.eq.s32.totalorder %s22, 3
      %p177 = por %p175, %p176
      %p179 = scmp.ne.s32.totalorder %s162, %s178
      %p180 = scmp.eq.s32.totalorder %s22, 0
      %p181 = por %p179, %p180
      %s182 = ssub.s32 %s24, %s31
      %p183 = scmp.eq.s32.totalorder %s182, 0
      %s185 = sadd.s32 %s184, 1
      %s186 = scalar_select %p183, %s184, %s185
      %p189 = pneg %p183
      %p190 = scmp.eq.s32.totalorder %s16, 3
      %p191 = por %p189, %p190
      %p192 = scmp.ne.s32.totalorder %s184, %s187
      %p193 = scmp.eq.s32.totalorder %s16, 0
      %p194 = por %p192, %p193
      %p195 = scmp.ne.s32.totalorder %s184, %s187
      %p196 = scmp.eq.s32.totalorder %s21, 3
      %p197 = por %p195, %p196
      %p198 = scmp.ne.s32.totalorder %s187, %s188
      %p199 = scmp.eq.s32.totalorder %s21, 0
      %p200 = por %p198, %p199
      %p201 = scmp.ne.s32.totalorder %s187, %s188
      %p202 = scmp.eq.s32.totalorder %s22, 3
      %p203 = por %p201, %p202
      %p205 = scmp.ne.s32.totalorder %s188, %s204
      %p206 = scmp.eq.s32.totalorder %s22, 0
      %p207 = por %p205, %p206
      %s208 = ssub.s32 %s23, %s35
      %p209 = scmp.eq.s32.totalorder %s208, 0
      %s211 = sadd.s32 %s210, 1
      %s212 = scalar_select %p209, %s210, %s211
      %p215 = pneg %p209
      %p216 = scmp.eq.s32.totalorder %s16, 3
      %p217 = por %p215, %p216
      %p218 = scmp.ne.s32.totalorder %s210, %s213
      %p219 = scmp.eq.s32.totalorder %s16, 0
      %p220 = por %p218, %p219
      %p221 = scmp.ne.s32.totalorder %s210, %s213
      %p222 = scmp.eq.s32.totalorder %s21, 3
      %p223 = por %p221, %p222
      %p224 = scmp.ne.s32.totalorder %s213, %s214
      %p225 = scmp.eq.s32.totalorder %s21, 0
      %p226 = por %p224, %p225
      %p227 = scmp.ne.s32.totalorder %s213, %s214
      %p228 = scmp.eq.s32.totalorder %s22, 3
      %p229 = por %p227, %p228
      %p231 = scmp.ne.s32.totalorder %s214, %s230
      %p232 = scmp.eq.s32.totalorder %s22, 0
      %p233 = por %p231, %p232
      %p234 = scmp.le.s32.totalorder 1, %s16
      %p235 = scmp.lt.s32.totalorder %s16, 5
      %p236 = pnand %p234, %p235
      %p237 = pneg %p236
      // Predicated region
      $region9: #{tpu_custom_call.1} parent=5 // pred_check
        _
      $region10: #{tpu_custom_call.1} parent=5 // pred_check_branch
        %239 = sbr.rel (%p236) target = $region12
      $region11: #{tpu_custom_call.1} parent=5 // pred_region
        %s240 = ssub.s32 %s16, 1
        // Predicated region
        $region13: #{tpu_custom_call.1} parent=11 // pred_check
          %p241 = pneg %p54
        $region14: #{tpu_custom_call.1} parent=11 // pred_check_branch
          %243 = sbr.rel (%p241) target = $region16
        $region15: #{tpu_custom_call.1} parent=11 // pred_region
          %s245 = ssub.s32 64, 64
          %246 = vsyncadd [#allocation5], %s245
          %s247 = smul.addr %s25, 64
          %s248 = scalar_lea.hbm %s0, %s247
          %s250 = sshll.u32 [#allocation4], 4
          %s251 = int_to_ptr.vmem [resolvable:$true] %s250
          %253 = dma.hbm_to_vmem [thread:$0]  %s248, 64, %s251, [#allocation5]
        $region16: #{tpu_custom_call.1} parent=11 // pred_fallthru
          _
        // Predicated region
        $region17: #{tpu_custom_call.1} parent=11 // pred_check
          %p254 = pneg %p75
        $region18: #{tpu_custom_call.1} parent=11 // pred_check_branch
          %256 = sbr.rel (%p254) target = $region20
        $region19: #{tpu_custom_call.1} parent=11 // pred_region
          %s258 = ssub.s32 128, 128
          %259 = vsyncadd [#allocation8], %s258
          %s260 = sshll.u32 [#allocation7], 4
          %s261 = int_to_ptr.vmem [resolvable:$true] %s260
          %266 = dma.hbm_to_vmem [thread:$0]  %s1, 128, %s261, [#allocation8], 64, 64, 4
        $region20: #{tpu_custom_call.1} parent=11 // pred_fallthru
          _
        // Predicated region
        $region21: #{tpu_custom_call.1} parent=11 // pred_check
          %p267 = pneg %p96
        $region22: #{tpu_custom_call.1} parent=11 // pred_check_branch
          %269 = sbr.rel (%p267) target = $region24
        $region23: #{tpu_custom_call.1} parent=11 // pred_region
          _
        $region24: #{tpu_custom_call.1} parent=11 // pred_fallthru
          _
      $region12: #{tpu_custom_call.1} parent=5 // pred_fallthru
        _
      %p270 = scmp.lt.s32.totalorder %s16, 4
      // Predicated region
      $region25: #{tpu_custom_call.1} parent=5 // pred_check
        %p271 = pneg %p270
      $region26: #{tpu_custom_call.1} parent=5 // pred_check_branch
        %273 = sbr.rel (%p271) target = $region28
      $region27: #{tpu_custom_call.1} parent=5 // pred_region
        // Predicated region
        $region29: #{tpu_custom_call.1} parent=27 // pred_check
          %p274 = pneg %p116
        $region30: #{tpu_custom_call.1} parent=27 // pred_check_branch
          %276 = sbr.rel (%p274) target = $region32
        $region31: #{tpu_custom_call.1} parent=27 // pred_region
          %s277 = sand.u32 %s16, 1
          %s278 = scalar_lea.sflag [#allocation5], %s277
          %s279 = sand.u32 %s106, 1
          %s280 = smul.addr %s279, 8
          %s281 = scalar_lea.vmem [#allocation9], %s280
          %s283 = ssub.s32 128, 128
          %284 = vsyncadd %s278, %s283
          %s285 = smul.addr %s24, 2
          %s286 = smul.addr %s285, 64
          %s287 = scalar_lea.hbm %s3, %s286
          %s288 = sshll.u32 %s281, 4
          %s289 = int_to_ptr.vmem [resolvable:$true] %s288
          %294 = dma.hbm_to_vmem [thread:$0]  %s287, 128, %s289, %s278, 64, 64, 4
        $region32: #{tpu_custom_call.1} parent=27 // pred_fallthru
          _
        // Predicated region
        $region33: #{tpu_custom_call.1} parent=27 // pred_check
          %p295 = pneg %p142
        $region34: #{tpu_custom_call.1} parent=27 // pred_check_branch
          %297 = sbr.rel (%p295) target = $region36
        $region35: #{tpu_custom_call.1} parent=27 // pred_region
          %p298 = scmp.lt.s32.totalorder %s24, 3
          %s299 = scalar_select %p298, %s24, 3
          %s300 = scalar_lea.vmem %s4, %s299
        $region36: #{tpu_custom_call.1} parent=27 // pred_fallthru
          _
        // Predicated region
        $region37: #{tpu_custom_call.1} parent=27 // pred_check
          %p301 = pneg %p168
        $region38: #{tpu_custom_call.1} parent=27 // pred_check_branch
          %303 = sbr.rel (%p301) target = $region40
        $region39: #{tpu_custom_call.1} parent=27 // pred_region
          %s304 = sand.u32 %s16, 1
          %s305 = scalar_lea.sflag [#allocation5], %s304
          %s306 = sand.u32 %s158, 1
          %s307 = smul.addr %s306, 16
          %s308 = scalar_lea.vmem [#allocation10], %s307
          %s310 = ssub.s32 256, 256
          %311 = vsyncadd %s305, %s310
          %s312 = smul.addr %s24, 4
          %s313 = smul.addr %s312, 64
          %s314 = scalar_lea.hbm %s5, %s313
          %s315 = sshll.u32 %s308, 4
          %s316 = int_to_ptr.vmem [resolvable:$true] %s315
          %321 = dma.hbm_to_vmem [thread:$0]  %s314, 256, %s316, %s305, 64, 64, 4
        $region40: #{tpu_custom_call.1} parent=27 // pred_fallthru
          _
        // Predicated region
        $region41: #{tpu_custom_call.1} parent=27 // pred_check
          %p322 = pneg %p194
        $region42: #{tpu_custom_call.1} parent=27 // pred_check_branch
          %324 = sbr.rel (%p322) target = $region44
        $region43: #{tpu_custom_call.1} parent=27 // pred_region
          %p325 = scmp.lt.s32.totalorder %s24, 3
          %s326 = scalar_select %p325, %s24, 3
          %s327 = scalar_lea.vmem %s6, %s326
        $region44: #{tpu_custom_call.1} parent=27 // pred_fallthru
          _
      $region28: #{tpu_custom_call.1} parent=5 // pred_fallthru
        _
      %p328 = scmp.le.s32.totalorder 1, %s16
      %p329 = scmp.lt.s32.totalorder %s16, 5
      %p330 = pnand %p328, %p329
      %p331 = pneg %p330
      // Predicated region
      $region45: #{tpu_custom_call.1} parent=5 // pred_check
        _
      $region46: #{tpu_custom_call.1} parent=5 // pred_check_branch
        %333 = sbr.rel (%p330) target = $region48
      $region47: #{tpu_custom_call.1} parent=5 // pred_region
        %s334 = ssub.s32 %s16, 1
        // Predicated region
        $region49: #{tpu_custom_call.1} parent=47 // pred_check
          %p335 = pneg %p54
        $region50: #{tpu_custom_call.1} parent=47 // pred_check_branch
          %337 = sbr.rel (%p335) target = $region52
        $region51: #{tpu_custom_call.1} parent=47 // pred_region
          %338 = dma.done [#allocation5], 64
        $region52: #{tpu_custom_call.1} parent=47 // pred_fallthru
          _
        // Predicated region
        $region53: #{tpu_custom_call.1} parent=47 // pred_check
          %p339 = pneg %p75
        $region54: #{tpu_custom_call.1} parent=47 // pred_check_branch
          %341 = sbr.rel (%p339) target = $region56
        $region55: #{tpu_custom_call.1} parent=47 // pred_region
          %342 = dma.done [#allocation8], 128
        $region56: #{tpu_custom_call.1} parent=47 // pred_fallthru
          _
        %s343 = sand.u32 %s21, 1
        %s344 = scalar_lea.sflag [#allocation5], %s343
        %s345 = sand.u32 %s109, 1
        %s346 = smul.addr %s345, 8
        %s347 = scalar_lea.vmem [#allocation9], %s346
        // Predicated region
        $region57: #{tpu_custom_call.1} parent=47 // pred_check
          %p348 = pneg %p122
        $region58: #{tpu_custom_call.1} parent=47 // pred_check_branch
          %350 = sbr.rel (%p348) target = $region60
        $region59: #{tpu_custom_call.1} parent=47 // pred_region
          %351 = dma.done %s344, 128
        $region60: #{tpu_custom_call.1} parent=47 // pred_fallthru
          _
        %s352 = sand.u32 %s21, 1
        %s353 = scalar_lea.sflag [#allocation5], %s352
        %s354 = sand.u32 %s161, 1
        %s355 = smul.addr %s354, 16
        %s356 = scalar_lea.vmem [#allocation10], %s355
        // Predicated region
        $region61: #{tpu_custom_call.1} parent=47 // pred_check
          %p357 = pneg %p174
        $region62: #{tpu_custom_call.1} parent=47 // pred_check_branch
          %359 = sbr.rel (%p357) target = $region64
        $region63: #{tpu_custom_call.1} parent=47 // pred_region
          %360 = dma.done %s353, 256
        $region64: #{tpu_custom_call.1} parent=47 // pred_fallthru
          _
        %p361 = pneg %p54
        %p362 = pneg %p51
        %p363 = pneg %p75
        %p364 = pneg %p72
        %p365 = pneg %p96
        %p366 = pneg %p93
        %s367 = sand.u32 %s21, 1
        %s368 = scalar_lea.sflag [#allocation5], %s367
        %s369 = sand.u32 %s109, 1
        %s370 = smul.addr %s369, 8
        %s371 = scalar_lea.vmem [#allocation9], %s370
        %p372 = pneg %p122
        %p373 = pneg %p119
        %p374 = scmp.lt.s32.totalorder %s26, 3
        %s375 = scalar_select %p374, %s26, 3
        %s376 = scalar_lea.vmem %s4, %s375
        %p377 = pneg %p148
        %p378 = pneg %p145
        %s379 = sand.u32 %s21, 1
        %s380 = scalar_lea.sflag [#allocation5], %s379
        %s381 = sand.u32 %s161, 1
        %s382 = smul.addr %s381, 16
        %s383 = scalar_lea.vmem [#allocation10], %s382
        %p384 = pneg %p174
        %p385 = pneg %p171
        %p386 = scmp.lt.s32.totalorder %s26, 3
        %s387 = scalar_select %p386, %s26, 3
        %s388 = scalar_lea.vmem %s6, %s387
        %p389 = pneg %p200
        %p390 = pneg %p197
        %p391 = pneg %p226
        %p392 = pneg %p223
        %p393 = scmp.lt.s32.totalorder %s26, 3
        %s394 = scalar_select %p393, %s26, 3
        %s395 = scalar_lea.vmem %s4, %s394
        %p396 = scmp.lt.s32.totalorder %s26, 3
        %s397 = scalar_select %p396, %s26, 3
        %s398 = scalar_lea.vmem %s6, %s397
        %p400 = scmp.eq.s32.totalorder %s26, 0
        // Predicated region
        $region65: #{tpu_custom_call.1} parent=47 // pred_check
          %p401 = pneg %p400
        $region66: #{tpu_custom_call.1} parent=47 // pred_check_branch
          %403 = sbr.rel (%p401) target = $region68
        $region67: #{tpu_custom_call.1} parent=47 // pred_region
          %v404 = vld [vmem:[#allocation4] sm:$0xf]
          %v405 = vld [vmem:[#allocation7] sm:$0xf]
          %v406 = vld [vmem:[#allocation7 + $0x4] sm:$0xf]
          %v407 = vld [vmem:[%s2] sm:$0x1]
          %v409 = vlaneseq
          %v410 = vshrl.u32 %v409, 7
          %v411 = vsub.s32 0, %v410
          %v412 = vrot.slane %v407, %v411
          %v416 = vunpack.c.l.b16 %v405
          %v417 = vunpack.c.l.b16 %v406
          %v418 = vpack.c.b16 %v417, %v416
          %vm420 = vcmask 130048
          %v422 = vsel %vm420, %v404, 0
          %424 = vmatprep.subr.bf16.mxu0 0
          %425 = vmatpush1.bf16.msra.mxu0 0
          %426 = vmatprep.subr.bf16.mxu0 0
          %427 = vmatpush1.bf16.msra.mxu0 0
          %428 = vmatprep.subr.bf16.mxu0 0
          %429 = vmatpush1.bf16.msra.mxu0 0
          %430 = vmatprep.subr.bf16.mxu0 0
          %431 = vmatpush1.bf16.msra.mxu0 0
          %432 = vmatprep.subr.bf16.mxu0 0
          %433 = vmatpush1.bf16.msra.mxu0 0
          %434 = vmatprep.subr.bf16.mxu0 0
          %435 = vmatpush1.bf16.msra.mxu0 0
          %436 = vmatprep.subr.bf16.mxu0 0
          %437 = vmatpush1.bf16.msra.mxu0 0
          %438 = vmatprep.subr.bf16.mxu0 0
          %439 = vmatpush1.bf16.msra.mxu0 %v418
          %440 = vmatprep.subr.bf16.mxu0 0
          %441 = vmatpush2.bf16.msra.mxu0 0
          %442 = vmatprep.subr.bf16.mxu0 0
          %443 = vmatpush2.bf16.msra.mxu0 0
          %444 = vmatprep.subr.bf16.mxu0 0
          %445 = vmatpush2.bf16.msra.mxu0 0
          %446 = vmatprep.subr.bf16.mxu0 0
          %447 = vmatpush2.bf16.msra.mxu0 0
          %448 = vmatprep.subr.bf16.mxu0 0
          %449 = vmatpush2.bf16.msra.mxu0 0
          %450 = vmatprep.subr.bf16.mxu0 0
          %451 = vmatpush2.bf16.msra.mxu0 0
          %452 = vmatprep.subr.bf16.mxu0 0
          %453 = vmatpush2.bf16.msra.mxu0 0
          %454 = vmatprep.subr.bf16.mxu0 0
          %455 = vmatpush2.bf16.msra.mxu0 0
          %456 = vmatprep.mubr.bf16.mxu0 0
          %457 = vmatmul.mubr.bf16.gmra.mxu0 %v422
          %v458 = vpop.f32.mrf.mxu0
          %v459 = vadd.f32 %v412, %v458
          %v460 = vpop.f32.mrf.mxu0
          %v461 = vpop.f32.mrf.mxu0
          %v462 = vpop.f32.mrf.mxu0
          %463 = vdwg.mxu0
          %v464 = vlaneseq
          %v465 = vand.u32 %v464, 127
          %vm466 = vcmp.lt.s32.totalorder %v465, 4
          %v467 = vsel %vm466, %v459, -1e+30
          %468 = vmax.xlane.f32.xlu0 %v467
          %v469 = vpop.xlane.xlu0 %468
          %v470 = vsub.f32 %v467, %v469
          %v471 = vmul.f32 %v470, 1.442695
          %v472 = vpow.pop %v471
          %473 = vadd.xlane.f32.xlu0 %v472
          %v474 = vpop.xlane.xlu0 %473
          %v475 = vrcp.pop %v474
          %v476 = vmul.f32 %v472, %v475
          %477 = vst [vmem:[#allocation2] sm:$0xff] %v476
          %478 = vst [vmem:[#allocation3] sm:$0xff] 0.0
        $region68: #{tpu_custom_call.1} parent=47 // pred_fallthru
          _
        %v479 = vld [vmem:[#allocation4] sm:$0xf]
        %v480 = vld [vmem:[%s347] sm:$0xf]
        %v481 = vld [vmem:[%s347 + $0x4] sm:$0xf]
        %v482 = vld [vmem:[%s395] sm:$0x1]
        %v484 = vlaneseq
        %v485 = vshrl.u32 %v484, 7
        %v486 = vsub.s32 0, %v485
        %v487 = vrot.slane %v482, %v486
        %v491 = vunpack.c.l.b16 %v480
        %v492 = vunpack.c.l.b16 %v481
        %v493 = vpack.c.b16 %v492, %v491
        %vm495 = vcmask 130048
        %v497 = vsel %vm495, %v479, 0
        %499 = vmatprep.subr.bf16.mxu0 0
        %500 = vmatpush1.bf16.msra.mxu0 0
        %501 = vmatprep.subr.bf16.mxu0 0
        %502 = vmatpush1.bf16.msra.mxu0 0
        %503 = vmatprep.subr.bf16.mxu0 0
        %504 = vmatpush1.bf16.msra.mxu0 0
        %505 = vmatprep.subr.bf16.mxu0 0
        %506 = vmatpush1.bf16.msra.mxu0 0
        %507 = vmatprep.subr.bf16.mxu0 0
        %508 = vmatpush1.bf16.msra.mxu0 0
        %509 = vmatprep.subr.bf16.mxu0 0
        %510 = vmatpush1.bf16.msra.mxu0 0
        %511 = vmatprep.subr.bf16.mxu0 0
        %512 = vmatpush1.bf16.msra.mxu0 0
        %513 = vmatprep.subr.bf16.mxu0 0
        %514 = vmatpush1.bf16.msra.mxu0 %v493
        %515 = vmatprep.subr.bf16.mxu0 0
        %516 = vmatpush2.bf16.msra.mxu0 0
        %517 = vmatprep.subr.bf16.mxu0 0
        %518 = vmatpush2.bf16.msra.mxu0 0
        %519 = vmatprep.subr.bf16.mxu0 0
        %520 = vmatpush2.bf16.msra.mxu0 0
        %521 = vmatprep.subr.bf16.mxu0 0
        %522 = vmatpush2.bf16.msra.mxu0 0
        %523 = vmatprep.subr.bf16.mxu0 0
        %524 = vmatpush2.bf16.msra.mxu0 0
        %525 = vmatprep.subr.bf16.mxu0 0
        %526 = vmatpush2.bf16.msra.mxu0 0
        %527 = vmatprep.subr.bf16.mxu0 0
        %528 = vmatpush2.bf16.msra.mxu0 0
        %529 = vmatprep.subr.bf16.mxu0 0
        %530 = vmatpush2.bf16.msra.mxu0 0
        %531 = vmatprep.mubr.bf16.mxu0 0
        %532 = vmatmul.mubr.bf16.gmra.mxu0 %v497
        %v533 = vpop.f32.mrf.mxu0
        %v534 = vadd.f32 %v487, %v533
        %v535 = vpop.f32.mrf.mxu0
        %v536 = vpop.f32.mrf.mxu0
        %v537 = vpop.f32.mrf.mxu0
        %538 = vdwg.mxu0
        %v539 = vmax.f32 %v534, 0.0
        %v540 = vpack.c.bf16 %v539, %v539
        %v541 = vld [vmem:[%s356] sm:$0xf]
        %v542 = vld [vmem:[%s356 + $0x4] sm:$0xf]
        %v543 = vld [vmem:[%s356 + $0x8] sm:$0xf]
        %v544 = vld [vmem:[%s356 + $0xc] sm:$0xf]
        %v545 = vld [vmem:[%s398] sm:$0x1]
        %v547 = vlaneseq
        %v548 = vshrl.u32 %v547, 7
        %v549 = vsub.s32 0, %v548
        %v550 = vrot.slane %v545, %v549
        %v556 = vunpack.c.l.b16 %v541
        %v557 = vunpack.c.l.b16 %v542
        %v558 = vunpack.c.l.b16 %v543
        %v559 = vunpack.c.l.b16 %v544
        %v560 = vpack.c.b16 %v557, %v556
        %v561 = vpack.c.b16 %v559, %v558
        %vm564 = vcmask 261120
        %v566 = vsel %vm564, %v540, 0
        %568 = vmatprep.subr.bf16.mxu0 0
        %569 = vmatpush1.bf16.msra.mxu0 0
        %570 = vmatprep.subr.bf16.mxu0 0
        %571 = vmatpush1.bf16.msra.mxu0 0
        %572 = vmatprep.subr.bf16.mxu0 0
        %573 = vmatpush1.bf16.msra.mxu0 0
        %574 = vmatprep.subr.bf16.mxu0 0
        %575 = vmatpush1.bf16.msra.mxu0 0
        %576 = vmatprep.subr.bf16.mxu0 0
        %577 = vmatpush1.bf16.msra.mxu0 0
        %578 = vmatprep.subr.bf16.mxu0 0
        %579 = vmatpush1.bf16.msra.mxu0 0
        %580 = vmatprep.subr.bf16.mxu0 0
        %581 = vmatpush1.bf16.msra.mxu0 %v561
        %582 = vmatprep.subr.bf16.mxu0 0
        %583 = vmatpush1.bf16.msra.mxu0 %v560
        %584 = vmatprep.subr.bf16.mxu0 0
        %585 = vmatpush2.bf16.msra.mxu0 0
        %586 = vmatprep.subr.bf16.mxu0 0
        %587 = vmatpush2.bf16.msra.mxu0 0
        %588 = vmatprep.subr.bf16.mxu0 0
        %589 = vmatpush2.bf16.msra.mxu0 0
        %590 = vmatprep.subr.bf16.mxu0 0
        %591 = vmatpush2.bf16.msra.mxu0 0
        %592 = vmatprep.subr.bf16.mxu0 0
        %593 = vmatpush2.bf16.msra.mxu0 0
        %594 = vmatprep.subr.bf16.mxu0 0
        %595 = vmatpush2.bf16.msra.mxu0 0
        %596 = vmatprep.subr.bf16.mxu0 0
        %597 = vmatpush2.bf16.msra.mxu0 0
        %598 = vmatprep.subr.bf16.mxu0 0
        %599 = vmatpush2.bf16.msra.mxu0 0
        %600 = vmatprep.mubr.bf16.mxu0 0
        %601 = vmatmul.mubr.bf16.gmra.mxu0 %v566
        %v602 = vpop.f32.mrf.mxu0
        %v603 = vadd.f32 %v550, %v602
        %v604 = vpop.f32.mrf.mxu0
        %v605 = vpop.f32.mrf.mxu0
        %v606 = vpop.f32.mrf.mxu0
        %607 = vdwg.mxu0
        %v608 = vmax.f32 %v603, 0.0
        %v609 = vld [vmem:[#allocation2] sm:$0xff]
        %v610 = vlaneseq
        %v611 = vand.u32 %v610, 127
        %v612 = vstv %s26
        %vm613 = vcmp.eq.s32.totalorder %v611, %v612
        %v614 = vsel %vm613, %v609, 0.0
        %615 = vadd.xlane.f32.xlu0 %v614
        %v616 = vpop.xlane.xlu0 %615
        %v617 = vld [vmem:[#allocation3] sm:$0xff]
        %v618 = vmul.f32 %v616, %v608
        %v619 = vadd.f32 %v617, %v618
        %620 = vst [vmem:[#allocation3] sm:$0xff] %v619
        %p621 = scmp.eq.s32.totalorder %s26, 3
        // Predicated region
        $region69: #{tpu_custom_call.1} parent=47 // pred_check
          %p622 = pneg %p621
        $region70: #{tpu_custom_call.1} parent=47 // pred_check_branch
          %624 = sbr.rel (%p622) target = $region72
        $region71: #{tpu_custom_call.1} parent=47 // pred_region
          %v625 = vld [vmem:[#allocation3] sm:$0xff]
          %626 = vst [vmem:[#allocation11] sm:$0xff] %v625
        $region72: #{tpu_custom_call.1} parent=47 // pred_fallthru
          _
        // Predicated region
        $region73: #{tpu_custom_call.1} parent=47 // pred_check
          %p627 = pneg %p223
        $region74: #{tpu_custom_call.1} parent=47 // pred_check_branch
          %629 = sbr.rel (%p627) target = $region76
        $region75: #{tpu_custom_call.1} parent=47 // pred_region
          %s631 = ssub.s32 128, 128
          %632 = vsyncadd [#allocation6], %s631
          %s633 = smul.addr %s25, 128
          %s634 = scalar_lea.hbm %s7, %s633
          %s636 = sshll.u32 [#allocation11], 4
          %s637 = int_to_ptr.vmem [resolvable:$true] %s636
          %639 = dma.vmem_to_hbm [thread:$0]  %s637, 128, %s634, [#allocation6]
        $region76: #{tpu_custom_call.1} parent=47 // pred_fallthru
          _
        // Predicated region
        $region77: #{tpu_custom_call.1} parent=47 // pred_check
          %p640 = pneg %p223
        $region78: #{tpu_custom_call.1} parent=47 // pred_check_branch
          %642 = sbr.rel (%p640) target = $region80
        $region79: #{tpu_custom_call.1} parent=47 // pred_region
          %643 = dma.done [#allocation6], 128
        $region80: #{tpu_custom_call.1} parent=47 // pred_fallthru
          _
      $region48: #{tpu_custom_call.1} parent=5 // pred_fallthru
        _
      %p644 = scmp.le.s32.totalorder 2, %s16
      // Predicated region
      $region81: #{tpu_custom_call.1} parent=5 // pred_check
        %p645 = pneg %p644
      $region82: #{tpu_custom_call.1} parent=5 // pred_check_branch
        %647 = sbr.rel (%p645) target = $region84
      $region83: #{tpu_custom_call.1} parent=5 // pred_region
        %s648 = ssub.s32 %s16, 2
      $region84: #{tpu_custom_call.1} parent=5 // pred_fallthru
        _
    $region6: #{tpu_custom_call.1} parent=1 // loop_footer
      %s20 = sadd.s32 1, %s16
    $region7: #{tpu_custom_call.1} parent=1 // loop_footer_branch
      %15 = sbr.rel target = $region3
    $region8: #{tpu_custom_call.1} parent=1 // loop_exit
      _
    %649 = vsyncpa [#allocation5], 1
    %s650 = scalar_lea.sflag [#allocation5], 1
    %651 = vsyncpa %s650, 1
    %652 = vsyncpa [#allocation8], 1
    %653 = vsyncpa [#allocation6], 1
    %s654 = scalar_lea.sflag [#allocation6], 1
    %655 = vsyncpa %s654, 1

</llo_original>
